<compile_context>
chip_gen: v5e
topology: v5e:2x2
jax: 0.10.0
libtpu: 0.0.40
codegen_flags: <defaults>
</compile_context>

<pallas_src>
import functools
import math

import jax
import jax.numpy as jnp
from jax import lax
from jax.experimental import pallas as pl
from jax.experimental.pallas import tpu as pltpu

EPS = 1e-5  # PyTorch BatchNorm1d default eps


def _round_up(v, m):
    return (v + m - 1) // m * m


def _gcn_matmul_stats_kernel(adj_ref, xw_ref, nn_ref, y_ref, sum_ref, sq_ref, acc_ref):
    """Pass A: y_tile = (adj_tile @ xW) * n_norm with K-tiled f32 accumulation;
    per-row-tile partial channel sum / sum-of-squares as (8, F) blocks."""
    k = pl.program_id(1)

    @pl.when(k == 0)
    def _init():
        acc_ref[...] = jnp.zeros_like(acc_ref)

    acc_ref[...] += jnp.dot(adj_ref[...], xw_ref[...],
                            preferred_element_type=jnp.float32)

    @pl.when(k == pl.num_programs(1) - 1)
    def _finalize():
        y = acc_ref[...] * nn_ref[...]                 # graph_norm (per-node), f32
        y_ref[...] = y.astype(y_ref.dtype)             # store intermediate (bf16 default)
        # Partial stats kept sublane-dense: reshape (tile_n, F) -> (tile_n//8, 8, F)
        # and reduce over the vreg groups (pure VPU adds); the remaining 8-row
        # reduction happens in the wrapper.
        rows, feats = y.shape
        yg = y.reshape(rows // 8, 8, feats)
        sum_ref[...] = jnp.sum(yg, axis=0)
        sq_ref[...] = jnp.sum(yg * yg, axis=0)


def _gcn_bn_relu_kernel(y_ref, scale_ref, shift_ref, o_ref):
    """Pass B: pre-folded BatchNorm (scale, shift) + ReLU — pure fma/relu stream."""
    y = y_ref[...].astype(jnp.float32)
    o_ref[...] = jnp.maximum(y * scale_ref[...] + shift_ref[...], 0.0).astype(o_ref.dtype)


@functools.partial(jax.jit, static_argnames=("tile_n", "tile_k", "operand_dtype"))
def graph_convolution_forward(x, adj, n_norm, weight, gamma, beta, *,
                              tile_n=256, tile_k=512, operand_dtype=jnp.bfloat16):
    """x: [N, F_in]; adj: [N, N]; n_norm: [N, 1]; weight: [F_in, F_out];
    gamma/beta: [F_out].  Returns [N, F_out] float32."""
    n, f_in = x.shape
    f_out = weight.shape[1]

    f32 = jnp.float32
    op_dt = jnp.dtype(operand_dtype)
    op_size = op_dt.itemsize

    f_out_pad = _round_up(f_out, 128)

    # Clamp tiles for small graphs; keep lane/sublane alignment.
    tile_n = min(tile_n, _round_up(n, 128))
    tile_k = min(tile_k, _round_up(n, 128))
    assert tile_n % 8 == 0 and tile_k % 128 == 0, "tile_n % 8 == 0 and tile_k % 128 == 0 required"
    n_pad = _round_up(n, math.lcm(tile_n, tile_k))
    n_tiles = n_pad // tile_n
    k_tiles = n_pad // tile_k

    # xW precomputed once (tiny N*F_in*F_out matmul, left to XLA), padded + cast.
    xw = jnp.dot(x.astype(f32), weight.astype(f32), preferred_element_type=f32)
    xw_p = jnp.zeros((n_pad, f_out_pad), op_dt).at[:n, :f_out].set(xw.astype(op_dt))
    # adj pad fused with the (bf16) cast: only one, half-size padded copy materialized.
    adj_p = jnp.zeros((n_pad, n_pad), op_dt).at[:n, :n].set(adj.astype(op_dt))
    nn_p = jnp.zeros((n_pad, 1), f32).at[:n, :].set(jnp.reshape(n_norm, (n, 1)).astype(f32))

    # ---- pass A: adj_tile @ xW (K-tiled), graph_norm, per-tile partial stats ----
    flops = 2 * n_pad * n_pad * f_out_pad
    bytes_accessed = (n_pad * n_pad * op_size                    # adj read once
                      + n_tiles * n_pad * f_out_pad * op_size    # xW re-streamed per row tile
                      + n_pad * f_out_pad * op_size              # y written
                      + n_pad * 4)                               # n_norm
    vmem_est = (2 * tile_n * tile_k * op_size                    # adj (double-buffered)
                + 2 * tile_k * f_out_pad * op_size               # xW
                + 2 * tile_n * 128 * 4                           # n_norm (lane-padded)
                + 2 * tile_n * f_out_pad * op_size               # y out
                + 2 * 2 * 8 * f_out_pad * 4                      # partial sum / sumsq out
                + tile_n * f_out_pad * 4)                        # f32 accumulator scratch
    vmem_limit = int(min(max(2 * vmem_est + (4 << 20), 16 << 20), 64 << 20))

    y_p, psum, psq = pl.pallas_call(
        _gcn_matmul_stats_kernel,
        grid=(n_tiles, k_tiles),
        in_specs=[
            pl.BlockSpec((tile_n, tile_k), lambda i, k: (i, k)),       # adj tile
            pl.BlockSpec((tile_k, f_out_pad), lambda i, k: (k, 0)),    # xW tile
            pl.BlockSpec((tile_n, 1), lambda i, k: (i, 0)),            # n_norm tile
        ],
        out_specs=[
            pl.BlockSpec((tile_n, f_out_pad), lambda i, k: (i, 0)),    # y tile
            pl.BlockSpec((8, f_out_pad), lambda i, k: (i, 0)),         # partial channel sum
            pl.BlockSpec((8, f_out_pad), lambda i, k: (i, 0)),         # partial channel sumsq
        ],
        out_shape=[
            jax.ShapeDtypeStruct((n_pad, f_out_pad), op_dt),
            jax.ShapeDtypeStruct((n_tiles * 8, f_out_pad), f32),
            jax.ShapeDtypeStruct((n_tiles * 8, f_out_pad), f32),
        ],
        scratch_shapes=[pltpu.VMEM((tile_n, f_out_pad), f32)],
        compiler_params=pltpu.CompilerParams(
            dimension_semantics=("parallel", "arbitrary"),
            vmem_limit_bytes=vmem_limit),
        cost_estimate=pl.CostEstimate(flops=flops, transcendentals=0,
                                      bytes_accessed=bytes_accessed),
    )(adj_p, xw_p, nn_p)

    # ---- fold BatchNorm (training-mode batch stats) into one (scale, shift) pair ----
    # Tiny [F_out_pad] ops; done once here instead of per tile inside pass B.
    inv_n = 1.0 / float(n)
    ch_sum = jnp.sum(psum, axis=0, keepdims=True)                      # [1, F]
    ch_sq = jnp.sum(psq, axis=0, keepdims=True)                        # [1, F]
    mean = ch_sum * inv_n
    var = jnp.maximum(ch_sq * inv_n - mean * mean, 0.0)                # biased, clamped
    inv_std = lax.rsqrt(var + EPS)
    g_p = jnp.zeros((1, f_out_pad), f32).at[:, :f_out].set(jnp.reshape(gamma, (1, -1)).astype(f32))
    b_p = jnp.zeros((1, f_out_pad), f32).at[:, :f_out].set(jnp.reshape(beta, (1, -1)).astype(f32))
    scale = g_p * inv_std
    shift = b_p - mean * scale

    # ---- pass B: folded BN + ReLU; tiles independent -> 'parallel' ----
    out_p = pl.pallas_call(
        _gcn_bn_relu_kernel,
        grid=(n_tiles,),
        in_specs=[
            pl.BlockSpec((tile_n, f_out_pad), lambda i: (i, 0)),       # y tile
            pl.BlockSpec((1, f_out_pad), lambda i: (0, 0)),            # scale
            pl.BlockSpec((1, f_out_pad), lambda i: (0, 0)),            # shift
        ],
        out_specs=pl.BlockSpec((tile_n, f_out_pad), lambda i: (i, 0)),
        out_shape=jax.ShapeDtypeStruct((n_pad, f_out_pad), f32),
        compiler_params=pltpu.CompilerParams(dimension_semantics=("parallel",)),
    )(y_p, scale, shift)

    return out_p[:n, :f_out]


def graph_convolution_reference(x, adj, n_norm, weight, gamma, beta, eps=EPS):
    prod = x @ weight                                # torch.mm(x, W)
    out = adj @ prod                                 # torch.sparse.mm(adj, prod), dense f32 here
    out = out * jnp.reshape(n_norm, (-1, 1))         # graph_norm
    mean = jnp.mean(out, axis=0, keepdims=True)      # BatchNorm1d, training mode
    var = jnp.mean((out - mean) ** 2, axis=0, keepdims=True)
    out = gamma[None, :] * (out - mean) / jnp.sqrt(var + eps) + beta[None, :]
    return jnp.maximum(out, 0.0)                     # F.relu


if __name__ == "__main__":
    # small graph: N nodes, input_dim -> output_dim
    N, in_dim, out_dim = 192, 16, 32

    key = jax.random.PRNGKey(0)
    kx, ka, kn, kw = jax.random.split(key, 4)

    x = jax.random.normal(kx, (N, in_dim), jnp.float32)

    # small random graph: symmetric 0/1 adjacency + self loops, row-normalized
    a = (jax.random.uniform(ka, (N, N)) < 0.1).astype(jnp.float32)
    a = jnp.maximum(a, a.T) + jnp.eye(N, dtype=jnp.float32)
    adj = a / jnp.sum(a, axis=1, keepdims=True)

    n_norm = jax.random.uniform(kn, (N, 1), jnp.float32, 0.5, 1.5)   # per-node graph norm
    weight = jax.random.normal(kw, (in_dim, out_dim), jnp.float32)   # nn.init.normal
    gamma = jnp.ones((out_dim,), jnp.float32)                        # BatchNorm1d affine
    beta = jnp.zeros((out_dim,), jnp.float32)

    ref = graph_convolution_reference(x, adj, n_norm, weight, gamma, beta)

    # f32-operand path with small tiles: exercises the multi-tile (4 x 2) K-tiled grid
    # and the partial-stat reduction; tight tolerance vs the f32 reference.
    out_f32 = graph_convolution_forward(x, adj, n_norm, weight, gamma, beta,
                                        tile_n=64, tile_k=128,
                                        operand_dtype=jnp.float32)
    out_f32 = jax.block_until_ready(out_f32)
    assert out_f32.shape == (N, out_dim)
    assert jnp.allclose(out_f32, ref, atol=2e-4, rtol=2e-4), (
        f"f32 mismatch vs reference: max abs diff {jnp.max(jnp.abs(out_f32 - ref))}")

    # default perf configuration: bf16 adj / xW / y (halves HBM traffic, native MXU
    # rate); tolerance loosened to account for bf16 operand rounding.
    out_bf16 = graph_convolution_forward(x, adj, n_norm, weight, gamma, beta)
    out_bf16 = jax.block_until_ready(out_bf16)
    assert out_bf16.shape == (N, out_dim)
    assert jnp.allclose(out_bf16, ref, atol=4e-2, rtol=4e-2), (
        f"bf16 mismatch vs reference: max abs diff {jnp.max(jnp.abs(out_bf16 - ref))}")

    print("KERNEL_OK")
</pallas_src>

<mosaic_0001>
module attributes {stable_mosaic.version = 11 : i64} {
  func.func @_gcn_matmul_stats_kernel(%arg0: i32, %arg1: i32, %arg2: memref<64x128xf32, #tpu.memory_space<vmem>>, %arg3: memref<128x128xf32, #tpu.memory_space<vmem>>, %arg4: memref<64x1xf32, #tpu.memory_space<vmem>>, %arg5: memref<64x128xf32, #tpu.memory_space<vmem>>, %arg6: memref<8x128xf32, #tpu.memory_space<vmem>>, %arg7: memref<8x128xf32, #tpu.memory_space<vmem>>, %arg8: memref<64x128xf32, #tpu.memory_space<vmem>>) attributes {dimension_semantics = [#tpu.dimension_semantics<parallel>, #tpu.dimension_semantics<arbitrary>], iteration_bounds = array<i64: 4, 2>, scalar_prefetch = 0 : i64, scratch_operands = 1 : i64, tpu.core_type = #tpu.core_type<tc>, window_params = [{transform_indices = @transform_0, window_bounds = array<i64: 64, 128>}, {transform_indices = @transform_1, window_bounds = array<i64: 128, 128>}, {transform_indices = @transform_2, window_bounds = array<i64: 64, 1>}, {transform_indices = @transform_3, window_bounds = array<i64: 64, 128>}, {transform_indices = @transform_4, window_bounds = array<i64: 8, 128>}, {transform_indices = @transform_5, window_bounds = array<i64: 8, 128>}]} {
    %c0_i32 = arith.constant 0 : i32
    %0 = arith.cmpi eq, %arg1, %c0_i32 : i32
    %1 = arith.extui %0 : i1 to i32
    %c0_i32_0 = arith.constant 0 : i32
    %2 = arith.cmpi ne, %1, %c0_i32_0 : i32
    scf.if %2 {
      %cst_9 = arith.constant 0.000000e+00 : f32
      %12 = vector.broadcast %cst_9 : f32 to vector<64x128xf32>
      %c0_10 = arith.constant 0 : index
      %c0_11 = arith.constant 0 : index
      %13 = vector.load %arg8[%c0_10, %c0_11] : memref<64x128xf32, #tpu.memory_space<vmem>>, vector<64x128xf32>
      tpu.vector_store %arg8[%c0_10, %c0_11], %12 {strides = array<i32>} : memref<64x128xf32, #tpu.memory_space<vmem>>, vector<64x128xf32>,
    } else {
    }
    %c0 = arith.constant 0 : index
    %c0_1 = arith.constant 0 : index
    %3 = vector.load %arg8[%c0, %c0_1] : memref<64x128xf32, #tpu.memory_space<vmem>>, vector<64x128xf32>
    %c0_2 = arith.constant 0 : index
    %c0_3 = arith.constant 0 : index
    %4 = vector.load %arg2[%c0_2, %c0_3] : memref<64x128xf32, #tpu.memory_space<vmem>>, vector<64x128xf32>
    %c0_4 = arith.constant 0 : index
    %c0_5 = arith.constant 0 : index
    %5 = vector.load %arg3[%c0_4, %c0_5] : memref<128x128xf32, #tpu.memory_space<vmem>>, vector<128x128xf32>
    %cst = arith.constant dense<0.000000e+00> : vector<64x128xf32>
    %6 = tpu.matmul %4, %5, %cst {dimension_numbers = #tpu.dot_dimension_numbers<[1], [0], [0], [1], [0, 0, 1, 1], [], []>} : vector<64x128xf32>, vector<128x128xf32>, vector<64x128xf32> -> vector<64x128xf32>
    %7 = arith.addf %3, %6 : vector<64x128xf32>
    %c0_6 = arith.constant 0 : index
    %c0_7 = arith.constant 0 : index
    %8 = vector.load %arg8[%c0_6, %c0_7] : memref<64x128xf32, #tpu.memory_space<vmem>>, vector<64x128xf32>
    tpu.vector_store %arg8[%c0_6, %c0_7], %7 {strides = array<i32>} : memref<64x128xf32, #tpu.memory_space<vmem>>, vector<64x128xf32>,
    %c1_i32 = arith.constant 1 : i32
    %9 = arith.cmpi eq, %arg1, %c1_i32 : i32
    %10 = arith.extui %9 : i1 to i32
    %c0_i32_8 = arith.constant 0 : i32
    %11 = arith.cmpi ne, %10, %c0_i32_8 : i32
    scf.if %11 {
      %c0_9 = arith.constant 0 : index
      %c0_10 = arith.constant 0 : index
      %12 = vector.load %arg8[%c0_9, %c0_10] : memref<64x128xf32, #tpu.memory_space<vmem>>, vector<64x128xf32>
      %c0_11 = arith.constant 0 : index
      %c0_12 = arith.constant 0 : index
      %13 = vector.load %arg4[%c0_11, %c0_12] : memref<64x1xf32, #tpu.memory_space<vmem>>, vector<64x1xf32>
      %14 = vector.broadcast %13 : vector<64x1xf32> to vector<64x128xf32>
      %15 = arith.mulf %12, %14 : vector<64x128xf32>
      %c0_13 = arith.constant 0 : index
      %c0_14 = arith.constant 0 : index
      %16 = vector.load %arg5[%c0_13, %c0_14] : memref<64x128xf32, #tpu.memory_space<vmem>>, vector<64x128xf32>
      tpu.vector_store %arg5[%c0_13, %c0_14], %15 {strides = array<i32>} : memref<64x128xf32, #tpu.memory_space<vmem>>, vector<64x128xf32>,
      %17 = vector.shape_cast %15 : vector<64x128xf32> to vector<8x8x128xf32>
      %cst_15 = arith.constant dense<0.000000e+00> : vector<8x128xf32>
      %18 = vector.multi_reduction <add>, %17, %cst_15 [0] : vector<8x8x128xf32> to vector<8x128xf32>
      %c0_16 = arith.constant 0 : index
      %c0_17 = arith.constant 0 : index
      %19 = vector.load %arg6[%c0_16, %c0_17] : memref<8x128xf32, #tpu.memory_space<vmem>>, vector<8x128xf32>
      tpu.vector_store %arg6[%c0_16, %c0_17], %18 {strides = array<i32>} : memref<8x128xf32, #tpu.memory_space<vmem>>, vector<8x128xf32>,
      %20 = arith.mulf %17, %17 : vector<8x8x128xf32>
      %cst_18 = arith.constant dense<0.000000e+00> : vector<8x128xf32>
      %21 = vector.multi_reduction <add>, %20, %cst_18 [0] : vector<8x8x128xf32> to vector<8x128xf32>
      %c0_19 = arith.constant 0 : index
      %c0_20 = arith.constant 0 : index
      %22 = vector.load %arg7[%c0_19, %c0_20] : memref<8x128xf32, #tpu.memory_space<vmem>>, vector<8x128xf32>
      tpu.vector_store %arg7[%c0_19, %c0_20], %21 {strides = array<i32>} : memref<8x128xf32, #tpu.memory_space<vmem>>, vector<8x128xf32>,
    } else {
    }
    return
  }
  func.func @transform_0(%arg0: i32, %arg1: i32) -> (i32, i32) {
    %c0_i32 = arith.constant 0 : i32
    return %arg0, %arg1 : i32, i32
  }
  func.func @transform_1(%arg0: i32, %arg1: i32) -> (i32, i32) {
    %c0_i32 = arith.constant 0 : i32
    %c0_i32_0 = arith.constant 0 : i32
    return %arg1, %c0_i32 : i32, i32
  }
  func.func @transform_2(%arg0: i32, %arg1: i32) -> (i32, i32) {
    %c0_i32 = arith.constant 0 : i32
    %c0_i32_0 = arith.constant 0 : i32
    return %arg0, %c0_i32 : i32, i32
  }
  func.func @transform_3(%arg0: i32, %arg1: i32) -> (i32, i32) {
    %c0_i32 = arith.constant 0 : i32
    %c0_i32_0 = arith.constant 0 : i32
    return %arg0, %c0_i32 : i32, i32
  }
  func.func @transform_4(%arg0: i32, %arg1: i32) -> (i32, i32) {
    %c0_i32 = arith.constant 0 : i32
    %c0_i32_0 = arith.constant 0 : i32
    return %arg0, %c0_i32 : i32, i32
  }
  func.func @transform_5(%arg0: i32, %arg1: i32) -> (i32, i32) {
    %c0_i32 = arith.constant 0 : i32
    %c0_i32_0 = arith.constant 0 : i32
    return %arg0, %c0_i32 : i32, i32
  }
}

module attributes {stable_mosaic.version = 11 : i64} {
  func.func @_gcn_bn_relu_kernel(%arg0: i32, %arg1: memref<64x128xf32, #tpu.memory_space<vmem>>, %arg2: memref<1x128xf32, #tpu.memory_space<vmem>>, %arg3: memref<1x128xf32, #tpu.memory_space<vmem>>, %arg4: memref<64x128xf32, #tpu.memory_space<vmem>>) attributes {dimension_semantics = [#tpu.dimension_semantics<parallel>], iteration_bounds = array<i64: 4>, scalar_prefetch = 0 : i64, scratch_operands = 0 : i64, tpu.core_type = #tpu.core_type<tc>, window_params = [{transform_indices = @transform_0, window_bounds = array<i64: 64, 128>}, {pipeline_mode = #tpu.pipeline_mode<synchronous>, transform_indices = @transform_1, window_bounds = array<i64: 1, 128>}, {pipeline_mode = #tpu.pipeline_mode<synchronous>, transform_indices = @transform_2, window_bounds = array<i64: 1, 128>}, {transform_indices = @transform_3, window_bounds = array<i64: 64, 128>}]} {
    %c0 = arith.constant 0 : index
    %c0_0 = arith.constant 0 : index
    %0 = vector.load %arg1[%c0, %c0_0] : memref<64x128xf32, #tpu.memory_space<vmem>>, vector<64x128xf32>
    %c0_1 = arith.constant 0 : index
    %c0_2 = arith.constant 0 : index
    %1 = vector.load %arg2[%c0_1, %c0_2] : memref<1x128xf32, #tpu.memory_space<vmem>>, vector<1x128xf32>
    %2 = vector.broadcast %1 : vector<1x128xf32> to vector<64x128xf32>
    %3 = arith.mulf %0, %2 : vector<64x128xf32>
    %c0_3 = arith.constant 0 : index
    %c0_4 = arith.constant 0 : index
    %4 = vector.load %arg3[%c0_3, %c0_4] : memref<1x128xf32, #tpu.memory_space<vmem>>, vector<1x128xf32>
    %5 = vector.broadcast %4 : vector<1x128xf32> to vector<64x128xf32>
    %6 = arith.addf %3, %5 : vector<64x128xf32>
    %cst = arith.constant 0.000000e+00 : f32
    %7 = vector.broadcast %cst : f32 to vector<64x128xf32>
    %8 = arith.maximumf %6, %7 : vector<64x128xf32>
    %c0_5 = arith.constant 0 : index
    %c0_6 = arith.constant 0 : index
    %9 = vector.load %arg4[%c0_5, %c0_6] : memref<64x128xf32, #tpu.memory_space<vmem>>, vector<64x128xf32>
    tpu.vector_store %arg4[%c0_5, %c0_6], %8 {strides = array<i32>} : memref<64x128xf32, #tpu.memory_space<vmem>>, vector<64x128xf32>,
    return
  }
  func.func @transform_0(%arg0: i32) -> (i32, i32) {
    %c0_i32 = arith.constant 0 : i32
    %c0_i32_0 = arith.constant 0 : i32
    return %arg0, %c0_i32 : i32, i32
  }
  func.func @transform_1(%arg0: i32) -> (i32, i32) {
    %c0_i32 = arith.constant 0 : i32
    %c0_i32_0 = arith.constant 0 : i32
    %c0_i32_1 = arith.constant 0 : i32
    return %c0_i32, %c0_i32_0 : i32, i32
  }
  func.func @transform_2(%arg0: i32) -> (i32, i32) {
    %c0_i32 = arith.constant 0 : i32
    %c0_i32_0 = arith.constant 0 : i32
    %c0_i32_1 = arith.constant 0 : i32
    return %c0_i32, %c0_i32_0 : i32, i32
  }
  func.func @transform_3(%arg0: i32) -> (i32, i32) {
    %c0_i32 = arith.constant 0 : i32
    %c0_i32_0 = arith.constant 0 : i32
    return %arg0, %c0_i32 : i32, i32
  }
}

</mosaic_0001>

<llo_original>
// kernel: graph_convolution_forward.3
$region0: #{graph_convolution_forward.3}
  #allocation0 [shape = 'u32[]', space=smem, size = 0x4, offset = 0x4, fixed_abs, tag = 'smem constant byte address 0x4 - core index']
  #allocation1 [shape = 'u32[72,128]{1,0:T(1,128)}', space=vmem, size = 0x9000, scoped, tag = 'internal scratch']
  %s0 = inlined_call_operand.vmem [shape: f32[256,128], index: 0, kind: input, shape index: {}]
  %s1 = inlined_call_operand.vmem [shape: f32[1,128], index: 1, kind: input, shape index: {}]
  %s2 = inlined_call_operand.vmem [shape: f32[1,128], index: 2, kind: input, shape index: {}]
  %s3 = inlined_call_operand.vmem [shape: f32[256,128], index: 3, kind: output, shape index: {}]
  %s4 = sld [smem:[#allocation0]]
  $region45: #{graph_convolution_forward.3} parent=0
    _
  %s6 = ssub.s32 1, %s4
  %s7 = scalar_select 0, %s6, %s4
  loop: start=0, step=1, limit=6
  $region2: #{graph_convolution_forward.3} parent=0 // loop_pre_header
    _
  $region3: #{graph_convolution_forward.3} parent=0 // loop_header
    %s9 = sphi 0, %s13
    %p10 = scmp.ge.s32.totalorder %s9, 6
    %s19 = sphi 0, %s21
    %s22 = sphi 0, %s19
    %s23 = sphi 0, %s22
    %s39 = sphi 0, %s23
    %s43 = sphi 0, %s43
    %s45 = sphi 0, %s43
    %s46 = sphi 0, %s45
    %s60 = sphi 0, %s46
    %s64 = sphi 0, %s64
    %s66 = sphi 0, %s64
    %s67 = sphi 0, %s66
    %s81 = sphi 0, %s67
    %s87 = sphi 0, %s89
    %s90 = sphi 0, %s87
    %s91 = sphi 0, %s90
    %s107 = sphi 0, %s91
  $region4: #{graph_convolution_forward.3} parent=0 // loop_header_branch
    %12 = sbr.rel (%p10) target = $region8
  $region5: #{graph_convolution_forward.3} parent=0 // loop_body
    %s14 = ssub.s32 %s9, 1
    %s15 = ssub.s32 %s9, 2
    %s16 = sadd.s32 %s9, 1
    %s17 = ssub.s32 %s9, %s16
    %p18 = scmp.eq.s32.totalorder %s17, 0
    %s20 = sadd.s32 %s19, 1
    %s21 = scalar_select %p18, %s19, %s20
    %p24 = pneg %p18
    %p25 = scmp.eq.s32.totalorder %s9, 3
    %p26 = por %p24, %p25
    %p27 = scmp.ne.s32.totalorder %s19, %s22
    %p28 = scmp.eq.s32.totalorder %s9, 0
    %p29 = por %p27, %p28
    %p30 = scmp.ne.s32.totalorder %s19, %s22
    %p31 = scmp.eq.s32.totalorder %s14, 3
    %p32 = por %p30, %p31
    %p33 = scmp.ne.s32.totalorder %s22, %s23
    %p34 = scmp.eq.s32.totalorder %s14, 0
    %p35 = por %p33, %p34
    %p36 = scmp.ne.s32.totalorder %s22, %s23
    %p37 = scmp.eq.s32.totalorder %s15, 3
    %p38 = por %p36, %p37
    %p40 = scmp.ne.s32.totalorder %s23, %s39
    %p41 = scmp.eq.s32.totalorder %s15, 0
    %p42 = por %p40, %p41
    %s44 = sadd.s32 %s43, 1
    %p47 = scmp.eq.s32.totalorder %s9, 3
    %p48 = scmp.ne.s32.totalorder %s43, %s45
    %p49 = scmp.eq.s32.totalorder %s9, 0
    %p50 = por %p48, %p49
    %p51 = scmp.ne.s32.totalorder %s43, %s45
    %p52 = scmp.eq.s32.totalorder %s14, 3
    %p53 = por %p51, %p52
    %p54 = scmp.ne.s32.totalorder %s45, %s46
    %p55 = scmp.eq.s32.totalorder %s14, 0
    %p56 = por %p54, %p55
    %p57 = scmp.ne.s32.totalorder %s45, %s46
    %p58 = scmp.eq.s32.totalorder %s15, 3
    %p59 = por %p57, %p58
    %p61 = scmp.ne.s32.totalorder %s46, %s60
    %p62 = scmp.eq.s32.totalorder %s15, 0
    %p63 = por %p61, %p62
    %s65 = sadd.s32 %s64, 1
    %p68 = scmp.eq.s32.totalorder %s9, 3
    %p69 = scmp.ne.s32.totalorder %s64, %s66
    %p70 = scmp.eq.s32.totalorder %s9, 0
    %p71 = por %p69, %p70
    %p72 = scmp.ne.s32.totalorder %s64, %s66
    %p73 = scmp.eq.s32.totalorder %s14, 3
    %p74 = por %p72, %p73
    %p75 = scmp.ne.s32.totalorder %s66, %s67
    %p76 = scmp.eq.s32.totalorder %s14, 0
    %p77 = por %p75, %p76
    %p78 = scmp.ne.s32.totalorder %s66, %s67
    %p79 = scmp.eq.s32.totalorder %s15, 3
    %p80 = por %p78, %p79
    %p82 = scmp.ne.s32.totalorder %s67, %s81
    %p83 = scmp.eq.s32.totalorder %s15, 0
    %p84 = por %p82, %p83
    %s85 = ssub.s32 %s9, %s16
    %p86 = scmp.eq.s32.totalorder %s85, 0
    %s88 = sadd.s32 %s87, 1
    %s89 = scalar_select %p86, %s87, %s88
    %p92 = pneg %p86
    %p93 = scmp.eq.s32.totalorder %s9, 3
    %p94 = por %p92, %p93
    %p95 = scmp.ne.s32.totalorder %s87, %s90
    %p96 = scmp.eq.s32.totalorder %s9, 0
    %p97 = por %p95, %p96
    %p98 = scmp.ne.s32.totalorder %s87, %s90
    %p99 = scmp.eq.s32.totalorder %s14, 3
    %p100 = por %p98, %p99
    %p101 = scmp.ne.s32.totalorder %s90, %s91
    %p102 = scmp.eq.s32.totalorder %s14, 0
    %p103 = por %p101, %p102
    %p104 = scmp.ne.s32.totalorder %s90, %s91
    %p105 = scmp.eq.s32.totalorder %s15, 3
    %p106 = por %p104, %p105
    %p108 = scmp.ne.s32.totalorder %s91, %s107
    %p109 = scmp.eq.s32.totalorder %s15, 0
    %p110 = por %p108, %p109
    %p111 = scmp.le.s32.totalorder 1, %s9
    %p112 = scmp.lt.s32.totalorder %s9, 5
    %p113 = pnand %p111, %p112
    %p114 = pneg %p113
    // Predicated region
    $region9: #{graph_convolution_forward.3} parent=5 // pred_check
      _
    $region10: #{graph_convolution_forward.3} parent=5 // pred_check_branch
      %116 = sbr.rel (%p113) target = $region12
    $region11: #{graph_convolution_forward.3} parent=5 // pred_region
      %s117 = ssub.s32 %s9, 1
      // Predicated region
      $region13: #{graph_convolution_forward.3} parent=11 // pred_check
        %p118 = pneg %p56
      $region14: #{graph_convolution_forward.3} parent=11 // pred_check_branch
        %120 = sbr.rel (%p118) target = $region16
      $region15: #{graph_convolution_forward.3} parent=11 // pred_region
        _
      $region16: #{graph_convolution_forward.3} parent=11 // pred_fallthru
        _
      // Predicated region
      $region17: #{graph_convolution_forward.3} parent=11 // pred_check
        %p121 = pneg %p77
      $region18: #{graph_convolution_forward.3} parent=11 // pred_check_branch
        %123 = sbr.rel (%p121) target = $region20
      $region19: #{graph_convolution_forward.3} parent=11 // pred_region
        _
      $region20: #{graph_convolution_forward.3} parent=11 // pred_fallthru
        _
    $region12: #{graph_convolution_forward.3} parent=5 // pred_fallthru
      _
    %p124 = scmp.lt.s32.totalorder %s9, 4
    // Predicated region
    $region21: #{graph_convolution_forward.3} parent=5 // pred_check
      %p125 = pneg %p124
    $region22: #{graph_convolution_forward.3} parent=5 // pred_check_branch
      %127 = sbr.rel (%p125) target = $region24
    $region23: #{graph_convolution_forward.3} parent=5 // pred_region
      // Predicated region
      $region25: #{graph_convolution_forward.3} parent=23 // pred_check
        %p128 = pneg %p29
      $region26: #{graph_convolution_forward.3} parent=23 // pred_check_branch
        %130 = sbr.rel (%p128) target = $region28
      $region27: #{graph_convolution_forward.3} parent=23 // pred_region
        %s131 = smul.u32 8, %s9
        %p132 = scmp.lt.s32.totalorder %s131, 31
        %s133 = scalar_select %p132, %s131, 31
        %s134 = smul.addr %s133, 8
        %s135 = scalar_lea.vmem %s0, %s134
        %s136 = smul.u32 8, %s9
      $region28: #{graph_convolution_forward.3} parent=23 // pred_fallthru
        _
    $region24: #{graph_convolution_forward.3} parent=5 // pred_fallthru
      _
    %p137 = scmp.le.s32.totalorder 1, %s9
    %p138 = scmp.lt.s32.totalorder %s9, 5
    %p139 = pnand %p137, %p138
    %p140 = pneg %p139
    // Predicated region
    $region29: #{graph_convolution_forward.3} parent=5 // pred_check
      _
    $region30: #{graph_convolution_forward.3} parent=5 // pred_check_branch
      %142 = sbr.rel (%p139) target = $region32
    $region31: #{graph_convolution_forward.3} parent=5 // pred_region
      %s143 = ssub.s32 %s9, 1
      %s144 = smul.u32 8, %s14
      %p145 = scmp.lt.s32.totalorder %s144, 31
      %s146 = scalar_select %p145, %s144, 31
      %s147 = smul.addr %s146, 8
      %s148 = scalar_lea.vmem %s0, %s147
      %p149 = pneg %p35
      %p150 = pneg %p32
      %p151 = pneg %p56
      %p152 = pneg %p53
      %p153 = pneg %p77
      %p154 = pneg %p74
      %p155 = pneg %p103
      %p156 = pneg %p100
      %s157 = smul.u32 8, %s14
      %p158 = scmp.lt.s32.totalorder %s157, 31
      %s159 = scalar_select %p158, %s157, 31
      %s160 = smul.addr %s159, 8
      %s161 = scalar_lea.vmem %s3, %s160
      %s162 = smul.u32 8, %s14
      %p163 = scmp.lt.s32.totalorder %s162, 31
      %s164 = scalar_select %p163, %s162, 31
      %s165 = smul.addr %s164, 8
      %s166 = scalar_lea.vmem %s0, %s165
      %s167 = smul.u32 8, %s14
      %s168 = smul.u32 8, %s14
      %p169 = scmp.lt.s32.totalorder %s168, 31
      %s170 = scalar_select %p169, %s168, 31
      %s171 = smul.addr %s170, 8
      %s172 = scalar_lea.vmem %s3, %s171
      %s173 = smul.u32 8, %s14
      %v174 = vld [vmem:[%s166] sm:$0xff]
      %v175 = vld [vmem:[%s166 + $0x8] sm:$0xff]
      %v176 = vld [vmem:[%s166 + $0x10] sm:$0xff]
      %v177 = vld [vmem:[%s166 + $0x18] sm:$0xff]
      %v178 = vld [vmem:[%s166 + $0x20] sm:$0xff]
      %v179 = vld [vmem:[%s166 + $0x28] sm:$0xff]
      %v180 = vld [vmem:[%s166 + $0x30] sm:$0xff]
      %v181 = vld [vmem:[%s166 + $0x38] sm:$0xff]
      %v182 = vld [vmem:[%s1] sm:$0x1]
      %v184 = vperm.slane %v182, 0
      %v186 = vmul.f32 %v174, %v184
      %v187 = vmul.f32 %v175, %v184
      %v188 = vmul.f32 %v176, %v184
      %v189 = vmul.f32 %v177, %v184
      %v190 = vmul.f32 %v178, %v184
      %v191 = vmul.f32 %v179, %v184
      %v192 = vmul.f32 %v180, %v184
      %v193 = vmul.f32 %v181, %v184
      %v194 = vld [vmem:[%s2] sm:$0x1]
      %v196 = vperm.slane %v194, 0
      %v198 = vadd.f32 %v186, %v196
      %v199 = vadd.f32 %v187, %v196
      %v200 = vadd.f32 %v188, %v196
      %v201 = vadd.f32 %v189, %v196
      %v202 = vadd.f32 %v190, %v196
      %v203 = vadd.f32 %v191, %v196
      %v204 = vadd.f32 %v192, %v196
      %v205 = vadd.f32 %v193, %v196
      %v206 = vmax.f32 %v198, 0.0
      %v207 = vmax.f32 %v199, 0.0
      %v208 = vmax.f32 %v200, 0.0
      %v209 = vmax.f32 %v201, 0.0
      %v210 = vmax.f32 %v202, 0.0
      %v211 = vmax.f32 %v203, 0.0
      %v212 = vmax.f32 %v204, 0.0
      %v213 = vmax.f32 %v205, 0.0
      %214 = vst [vmem:[%s172] sm:$0xff] %v206
      %215 = vst [vmem:[%s172 + $0x8] sm:$0xff] %v207
      %216 = vst [vmem:[%s172 + $0x10] sm:$0xff] %v208
      %217 = vst [vmem:[%s172 + $0x18] sm:$0xff] %v209
      %218 = vst [vmem:[%s172 + $0x20] sm:$0xff] %v210
      %219 = vst [vmem:[%s172 + $0x28] sm:$0xff] %v211
      %220 = vst [vmem:[%s172 + $0x30] sm:$0xff] %v212
      %221 = vst [vmem:[%s172 + $0x38] sm:$0xff] %v213
      %s222 = smul.u32 8, %s14
      %p223 = scmp.lt.s32.totalorder %s222, 31
      %s224 = scalar_select %p223, %s222, 31
      %s225 = smul.addr %s224, 8
      %s226 = scalar_lea.vmem %s3, %s225
      // Predicated region
      $region33: #{graph_convolution_forward.3} parent=31 // pred_check
        %p227 = pneg %p100
      $region34: #{graph_convolution_forward.3} parent=31 // pred_check_branch
        %229 = sbr.rel (%p227) target = $region36
      $region35: #{graph_convolution_forward.3} parent=31 // pred_region
        %s230 = smul.u32 8, %s14
      $region36: #{graph_convolution_forward.3} parent=31 // pred_fallthru
        _
    $region32: #{graph_convolution_forward.3} parent=5 // pred_fallthru
      _
    %p231 = scmp.le.s32.totalorder 2, %s9
    // Predicated region
    $region37: #{graph_convolution_forward.3} parent=5 // pred_check
      %p232 = pneg %p231
    $region38: #{graph_convolution_forward.3} parent=5 // pred_check_branch
      %234 = sbr.rel (%p232) target = $region40
    $region39: #{graph_convolution_forward.3} parent=5 // pred_region
      %s235 = ssub.s32 %s9, 2
      // Predicated region
      $region41: #{graph_convolution_forward.3} parent=39 // pred_check
        %p236 = pneg %p106
      $region42: #{graph_convolution_forward.3} parent=39 // pred_check_branch
        %238 = sbr.rel (%p236) target = $region44
      $region43: #{graph_convolution_forward.3} parent=39 // pred_region
        %s239 = smul.u32 8, %s15
        %p240 = scmp.lt.s32.totalorder %s239, 31
        %s241 = scalar_select %p240, %s239, 31
        %s242 = smul.addr %s241, 8
        %s243 = scalar_lea.vmem %s3, %s242
      $region44: #{graph_convolution_forward.3} parent=39 // pred_fallthru
        _
    $region40: #{graph_convolution_forward.3} parent=5 // pred_fallthru
      _
  $region6: #{graph_convolution_forward.3} parent=0 // loop_footer
    %s13 = sadd.s32 1, %s9
  $region7: #{graph_convolution_forward.3} parent=0 // loop_footer_branch
    %8 = sbr.rel target = $region3
  $region8: #{graph_convolution_forward.3} parent=0 // loop_exit
    _

// kernel: graph_convolution_forward.2
$region0: #{graph_convolution_forward.2}
  #allocation0 [shape = 'u32[]', space=smem, size = 0x4, offset = 0x4, fixed_abs, tag = 'smem constant byte address 0x4 - core index']
  #allocation1 [shape = 'u32[72,128]{1,0:T(1,128)}', space=vmem, size = 0x9000, scoped, tag = 'internal scratch']
  #allocation2 [shape = 'f32[64,128]{1,0:T(8,128)}', space=vmem, size = 0x8000, scoped, tag = 'scratch operand']
  %s0 = inlined_call_operand.vmem [shape: f32[256,256], index: 0, kind: input, shape index: {}]
  %s1 = inlined_call_operand.vmem [shape: f32[256,128], index: 1, kind: input, shape index: {}]
  %s2 = inlined_call_operand.vmem [shape: f32[256,1], index: 2, kind: input, shape index: {}]
  %s3 = inlined_call_operand.vmem [shape: f32[256,128], index: 3, kind: output, shape index: {0}]
  %s4 = inlined_call_operand.vmem [shape: f32[32,128], index: 4, kind: output, shape index: {1}]
  %s5 = inlined_call_operand.vmem [shape: f32[32,128], index: 5, kind: output, shape index: {2}]
  %6 = xla_tuple %s3, %s4, %s5
  %s7 = sld [smem:[#allocation0]]
  $region107: #{graph_convolution_forward.2} parent=0
    _
  %s9 = ssub.s32 1, %s7
  %s10 = scalar_select 0, %s9, %s7
  $region1: #{graph_convolution_forward.2} parent=0
    #allocation3 [shape = 'u8[65536]{0}', space=vmem, size = 0x10000, scoped, tag = 'input window, operand 0']
    loop: start=0, step=1, limit=10
    $region2: #{graph_convolution_forward.2} parent=1 // loop_pre_header
      _
    $region3: #{graph_convolution_forward.2} parent=1 // loop_header
      %s12 = sphi 0, %s16
      %p13 = scmp.ge.s32.totalorder %s12, 10
      %s19 = sphi 0, %s31
      %s20 = sphi 0, %s27
      %s21 = sphi 0, %s19
      %s22 = sphi 0, %s20
      %s23 = sphi 0, %s21
      %s24 = sphi 0, %s22
      %s36 = sphi 0, %s38
      %s39 = sphi 0, %s36
      %s40 = sphi 0, %s39
      %s56 = sphi 0, %s40
      %s62 = sphi 0, %s64
      %s65 = sphi 0, %s62
      %s66 = sphi 0, %s65
      %s82 = sphi 0, %s66
      %s88 = sphi 0, %s90
      %s91 = sphi 0, %s88
      %s92 = sphi 0, %s91
      %s108 = sphi 0, %s92
      %s114 = sphi 0, %s116
      %s117 = sphi 0, %s114
      %s118 = sphi 0, %s117
      %s134 = sphi 0, %s118
      %s140 = sphi 0, %s142
      %s143 = sphi 0, %s140
      %s144 = sphi 0, %s143
      %s160 = sphi 0, %s144
      %s166 = sphi 0, %s168
      %s169 = sphi 0, %s166
      %s170 = sphi 0, %s169
      %s186 = sphi 0, %s170
    $region4: #{graph_convolution_forward.2} parent=1 // loop_header_branch
      %15 = sbr.rel (%p13) target = $region8
    $region5: #{graph_convolution_forward.2} parent=1 // loop_body
      %s17 = ssub.s32 %s12, 1
      %s18 = ssub.s32 %s12, 2
      %s25 = sadd.s32 1, %s20
      %p26 = scmp.ge.s32.totalorder %s25, 2
      %s27 = scalar_select %p26, 0, %s25
      %s28 = sadd.s32 1, %s19
      %s29 = scalar_select %p26, %s28, %s19
      %p30 = scmp.ge.s32.totalorder %s29, 4
      %s31 = scalar_select %p30, 0, %s29
      %s32 = ssub.s32 %s19, %s31
      %s33 = ssub.s32 %s20, %s27
      %s34 = sor.u32 %s32, %s33
      %p35 = scmp.eq.s32.totalorder %s34, 0
      %s37 = sadd.s32 %s36, 1
      %s38 = scalar_select %p35, %s36, %s37
      %p41 = pneg %p35
      %p42 = scmp.eq.s32.totalorder %s12, 7
      %p43 = por %p41, %p42
      %p44 = scmp.ne.s32.totalorder %s36, %s39
      %p45 = scmp.eq.s32.totalorder %s12, 0
      %p46 = por %p44, %p45
      %p47 = scmp.ne.s32.totalorder %s36, %s39
      %p48 = scmp.eq.s32.totalorder %s17, 7
      %p49 = por %p47, %p48
      %p50 = scmp.ne.s32.totalorder %s39, %s40
      %p51 = scmp.eq.s32.totalorder %s17, 0
      %p52 = por %p50, %p51
      %p53 = scmp.ne.s32.totalorder %s39, %s40
      %p54 = scmp.eq.s32.totalorder %s18, 7
      %p55 = por %p53, %p54
      %p57 = scmp.ne.s32.totalorder %s40, %s56
      %p58 = scmp.eq.s32.totalorder %s18, 0
      %p59 = por %p57, %p58
      %s60 = ssub.s32 %s20, %s27
      %p61 = scmp.eq.s32.totalorder %s60, 0
      %s63 = sadd.s32 %s62, 1
      %s64 = scalar_select %p61, %s62, %s63
      %p67 = pneg %p61
      %p68 = scmp.eq.s32.totalorder %s12, 7
      %p69 = por %p67, %p68
      %p70 = scmp.ne.s32.totalorder %s62, %s65
      %p71 = scmp.eq.s32.totalorder %s12, 0
      %p72 = por %p70, %p71
      %p73 = scmp.ne.s32.totalorder %s62, %s65
      %p74 = scmp.eq.s32.totalorder %s17, 7
      %p75 = por %p73, %p74
      %p76 = scmp.ne.s32.totalorder %s65, %s66
      %p77 = scmp.eq.s32.totalorder %s17, 0
      %p78 = por %p76, %p77
      %p79 = scmp.ne.s32.totalorder %s65, %s66
      %p80 = scmp.eq.s32.totalorder %s18, 7
      %p81 = por %p79, %p80
      %p83 = scmp.ne.s32.totalorder %s66, %s82
      %p84 = scmp.eq.s32.totalorder %s18, 0
      %p85 = por %p83, %p84
      %s86 = ssub.s32 %s19, %s31
      %p87 = scmp.eq.s32.totalorder %s86, 0
      %s89 = sadd.s32 %s88, 1
      %s90 = scalar_select %p87, %s88, %s89
      %p93 = pneg %p87
      %p94 = scmp.eq.s32.totalorder %s12, 7
      %p95 = por %p93, %p94
      %p96 = scmp.ne.s32.totalorder %s88, %s91
      %p97 = scmp.eq.s32.totalorder %s12, 0
      %p98 = por %p96, %p97
      %p99 = scmp.ne.s32.totalorder %s88, %s91
      %p100 = scmp.eq.s32.totalorder %s17, 7
      %p101 = por %p99, %p100
      %p102 = scmp.ne.s32.totalorder %s91, %s92
      %p103 = scmp.eq.s32.totalorder %s17, 0
      %p104 = por %p102, %p103
      %p105 = scmp.ne.s32.totalorder %s91, %s92
      %p106 = scmp.eq.s32.totalorder %s18, 7
      %p107 = por %p105, %p106
      %p109 = scmp.ne.s32.totalorder %s92, %s108
      %p110 = scmp.eq.s32.totalorder %s18, 0
      %p111 = por %p109, %p110
      %s112 = ssub.s32 %s19, %s31
      %p113 = scmp.eq.s32.totalorder %s112, 0
      %s115 = sadd.s32 %s114, 1
      %s116 = scalar_select %p113, %s114, %s115
      %p119 = pneg %p113
      %p120 = scmp.eq.s32.totalorder %s12, 7
      %p121 = por %p119, %p120
      %p122 = scmp.ne.s32.totalorder %s114, %s117
      %p123 = scmp.eq.s32.totalorder %s12, 0
      %p124 = por %p122, %p123
      %p125 = scmp.ne.s32.totalorder %s114, %s117
      %p126 = scmp.eq.s32.totalorder %s17, 7
      %p127 = por %p125, %p126
      %p128 = scmp.ne.s32.totalorder %s117, %s118
      %p129 = scmp.eq.s32.totalorder %s17, 0
      %p130 = por %p128, %p129
      %p131 = scmp.ne.s32.totalorder %s117, %s118
      %p132 = scmp.eq.s32.totalorder %s18, 7
      %p133 = por %p131, %p132
      %p135 = scmp.ne.s32.totalorder %s118, %s134
      %p136 = scmp.eq.s32.totalorder %s18, 0
      %p137 = por %p135, %p136
      %s138 = ssub.s32 %s19, %s31
      %p139 = scmp.eq.s32.totalorder %s138, 0
      %s141 = sadd.s32 %s140, 1
      %s142 = scalar_select %p139, %s140, %s141
      %p145 = pneg %p139
      %p146 = scmp.eq.s32.totalorder %s12, 7
      %p147 = por %p145, %p146
      %p148 = scmp.ne.s32.totalorder %s140, %s143
      %p149 = scmp.eq.s32.totalorder %s12, 0
      %p150 = por %p148, %p149
      %p151 = scmp.ne.s32.totalorder %s140, %s143
      %p152 = scmp.eq.s32.totalorder %s17, 7
      %p153 = por %p151, %p152
      %p154 = scmp.ne.s32.totalorder %s143, %s144
      %p155 = scmp.eq.s32.totalorder %s17, 0
      %p156 = por %p154, %p155
      %p157 = scmp.ne.s32.totalorder %s143, %s144
      %p158 = scmp.eq.s32.totalorder %s18, 7
      %p159 = por %p157, %p158
      %p161 = scmp.ne.s32.totalorder %s144, %s160
      %p162 = scmp.eq.s32.totalorder %s18, 0
      %p163 = por %p161, %p162
      %s164 = ssub.s32 %s19, %s31
      %p165 = scmp.eq.s32.totalorder %s164, 0
      %s167 = sadd.s32 %s166, 1
      %s168 = scalar_select %p165, %s166, %s167
      %p171 = pneg %p165
      %p172 = scmp.eq.s32.totalorder %s12, 7
      %p173 = por %p171, %p172
      %p174 = scmp.ne.s32.totalorder %s166, %s169
      %p175 = scmp.eq.s32.totalorder %s12, 0
      %p176 = por %p174, %p175
      %p177 = scmp.ne.s32.totalorder %s166, %s169
      %p178 = scmp.eq.s32.totalorder %s17, 7
      %p179 = por %p177, %p178
      %p180 = scmp.ne.s32.totalorder %s169, %s170
      %p181 = scmp.eq.s32.totalorder %s17, 0
      %p182 = por %p180, %p181
      %p183 = scmp.ne.s32.totalorder %s169, %s170
      %p184 = scmp.eq.s32.totalorder %s18, 7
      %p185 = por %p183, %p184
      %p187 = scmp.ne.s32.totalorder %s170, %s186
      %p188 = scmp.eq.s32.totalorder %s18, 0
      %p189 = por %p187, %p188
      %p190 = scmp.le.s32.totalorder 1, %s12
      %p191 = scmp.lt.s32.totalorder %s12, 9
      %p192 = pnand %p190, %p191
      %p193 = pneg %p192
      // Predicated region
      $region9: #{graph_convolution_forward.2} parent=5 // pred_check
        _
      $region10: #{graph_convolution_forward.2} parent=5 // pred_check_branch
        %195 = sbr.rel (%p192) target = $region12
      $region11: #{graph_convolution_forward.2} parent=5 // pred_region
        %s196 = ssub.s32 %s12, 1
      $region12: #{graph_convolution_forward.2} parent=5 // pred_fallthru
        _
      %p197 = scmp.lt.s32.totalorder %s12, 8
      // Predicated region
      $region13: #{graph_convolution_forward.2} parent=5 // pred_check
        %p198 = pneg %p197
      $region14: #{graph_convolution_forward.2} parent=5 // pred_check_branch
        %200 = sbr.rel (%p198) target = $region16
      $region15: #{graph_convolution_forward.2} parent=5 // pred_region
        // Predicated region
        $region17: #{graph_convolution_forward.2} parent=15 // pred_check
          %p201 = pneg %p46
        $region18: #{graph_convolution_forward.2} parent=15 // pred_check_branch
          %203 = sbr.rel (%p201) target = $region20
        $region19: #{graph_convolution_forward.2} parent=15 // pred_region
          %s204 = sand.u32 %s36, 1
          %s205 = sand.u32 %s36, 1
          %s206 = smul.addr %s205, 64
          %s207 = scalar_lea.vmem [#allocation3], %s206
          %s208 = smul.u32 8, %s19
          %s209 = smul.addr %s208, 2
          %s210 = sadd.s32 %s20, %s209
          %s211 = smul.addr %s210, 8
          %s212 = scalar_lea.vmem %s0, %s211
          // Predicated region
          $region21: #{graph_convolution_forward.2} parent=19 // pred_check
            _
          $region22: #{graph_convolution_forward.2} parent=19 // pred_check_branch
            %214 = sbr.rel (0) target = $region24
          $region23: #{graph_convolution_forward.2} parent=19 // pred_region
            // Predicated region
            $region25: #{graph_convolution_forward.2} parent=23 // pred_check
              _
            $region26: #{graph_convolution_forward.2} parent=23 // pred_check_branch
              %216 = sbr.rel (0) target = $region28
            $region27: #{graph_convolution_forward.2} parent=23 // pred_region
              // Predicated region
              $region40: #{graph_convolution_forward.2} parent=27 // pred_check
                _
              $region41: #{graph_convolution_forward.2} parent=27 // pred_check_branch
                %246 = sbr.rel (0) target = $region43
              $region42: #{graph_convolution_forward.2} parent=27 // pred_region
                loop: start=0, step=1, limit=1
                $region44: #{graph_convolution_forward.2} parent=42 // loop_pre_header
                  _
                $region45: #{graph_convolution_forward.2} parent=42 // loop_header
                  %s248 = sphi 0, %s252
                  %p249 = scmp.ge.s32.totalorder %s248, 1
                  %s253 = sphi %s212, %s212
                  %s254 = sphi %s207, %s207
                $region46: #{graph_convolution_forward.2} parent=42 // loop_header_branch
                  %251 = sbr.rel (%p249) target = $region50
                $region47: #{graph_convolution_forward.2} parent=42 // loop_body
                  %v255 = vld [vmem:[%s253] sm:$0xff]
                  %256 = vst [vmem:[%s254] sm:$0xff] %v255
                  %v257 = vld [vmem:[%s253 + $0x10] sm:$0xff]
                  %258 = vst [vmem:[%s254 + $0x8] sm:$0xff] %v257
                  %v259 = vld [vmem:[%s253 + $0x20] sm:$0xff]
                  %260 = vst [vmem:[%s254 + $0x10] sm:$0xff] %v259
                  %v261 = vld [vmem:[%s253 + $0x30] sm:$0xff]
                  %262 = vst [vmem:[%s254 + $0x18] sm:$0xff] %v261
                  %v263 = vld [vmem:[%s253 + $0x40] sm:$0xff]
                  %264 = vst [vmem:[%s254 + $0x20] sm:$0xff] %v263
                  %v265 = vld [vmem:[%s253 + $0x50] sm:$0xff]
                  %266 = vst [vmem:[%s254 + $0x28] sm:$0xff] %v265
                  %v267 = vld [vmem:[%s253 + $0x60] sm:$0xff]
                  %268 = vst [vmem:[%s254 + $0x30] sm:$0xff] %v267
                  %v269 = vld [vmem:[%s253 + $0x70] sm:$0xff]
                  %270 = vst [vmem:[%s254 + $0x38] sm:$0xff] %v269
                $region48: #{graph_convolution_forward.2} parent=42 // loop_footer
                  %s252 = sadd.s32 1, %s248
                $region49: #{graph_convolution_forward.2} parent=42 // loop_footer_branch
                  %247 = sbr.rel target = $region45
                $region50: #{graph_convolution_forward.2} parent=42 // loop_exit
                  _
              $region43: #{graph_convolution_forward.2} parent=27 // pred_fallthru
                _
              // Predicated region
              $region51: #{graph_convolution_forward.2} parent=27 // pred_check
                _
              $region52: #{graph_convolution_forward.2} parent=27 // pred_check_branch
                %272 = sbr.rel target = $region54
              $region53: #{graph_convolution_forward.2} parent=27 // pred_region
                _
              $region54: #{graph_convolution_forward.2} parent=27 // pred_fallthru
                _
            $region28: #{graph_convolution_forward.2} parent=23 // pred_fallthru
              _
            // Predicated region
            $region29: #{graph_convolution_forward.2} parent=23 // pred_check
              _
            $region30: #{graph_convolution_forward.2} parent=23 // pred_check_branch
              %218 = sbr.rel target = $region32
            $region31: #{graph_convolution_forward.2} parent=23 // pred_region
              %s220 = ssub.s32 256, 1
              loop: start=0, step=1, limit=1
              $region33: #{graph_convolution_forward.2} parent=31 // loop_pre_header
                _
              $region34: #{graph_convolution_forward.2} parent=31 // loop_header
                %s222 = sphi 0, %s226
                %p223 = scmp.ge.s32.totalorder %s222, 1
                %s227 = sphi %s212, %s212
                %s228 = sphi %s207, %s207
              $region35: #{graph_convolution_forward.2} parent=31 // loop_header_branch
                %225 = sbr.rel (%p223) target = $region39
              $region36: #{graph_convolution_forward.2} parent=31 // loop_body
                %v229 = vld [vmem:[%s227] sm:%s220]
                %230 = vst [vmem:[%s228] sm:%s220] %v229
                %v231 = vld [vmem:[%s227 + $0x10] sm:%s220]
                %232 = vst [vmem:[%s228 + $0x8] sm:%s220] %v231
                %v233 = vld [vmem:[%s227 + $0x20] sm:%s220]
                %234 = vst [vmem:[%s228 + $0x10] sm:%s220] %v233
                %v235 = vld [vmem:[%s227 + $0x30] sm:%s220]
                %236 = vst [vmem:[%s228 + $0x18] sm:%s220] %v235
                %v237 = vld [vmem:[%s227 + $0x40] sm:%s220]
                %238 = vst [vmem:[%s228 + $0x20] sm:%s220] %v237
                %v239 = vld [vmem:[%s227 + $0x50] sm:%s220]
                %240 = vst [vmem:[%s228 + $0x28] sm:%s220] %v239
                %v241 = vld [vmem:[%s227 + $0x60] sm:%s220]
                %242 = vst [vmem:[%s228 + $0x30] sm:%s220] %v241
                %v243 = vld [vmem:[%s227 + $0x70] sm:%s220]
                %244 = vst [vmem:[%s228 + $0x38] sm:%s220] %v243
              $region37: #{graph_convolution_forward.2} parent=31 // loop_footer
                %s226 = sadd.s32 1, %s222
              $region38: #{graph_convolution_forward.2} parent=31 // loop_footer_branch
                %221 = sbr.rel target = $region34
              $region39: #{graph_convolution_forward.2} parent=31 // loop_exit
                _
            $region32: #{graph_convolution_forward.2} parent=23 // pred_fallthru
              _
          $region24: #{graph_convolution_forward.2} parent=19 // pred_fallthru
            _
          %273 = vnop
        $region20: #{graph_convolution_forward.2} parent=15 // pred_fallthru
          _
        // Predicated region
        $region55: #{graph_convolution_forward.2} parent=15 // pred_check
          %p274 = pneg %p72
        $region56: #{graph_convolution_forward.2} parent=15 // pred_check_branch
          %276 = sbr.rel (%p274) target = $region58
        $region57: #{graph_convolution_forward.2} parent=15 // pred_region
          %s277 = smul.u32 16, %s20
          %p278 = scmp.lt.s32.totalorder %s277, 31
          %s279 = scalar_select %p278, %s277, 31
          %s280 = smul.addr %s279, 8
          %s281 = scalar_lea.vmem %s1, %s280
          %s282 = smul.u32 16, %s20
        $region58: #{graph_convolution_forward.2} parent=15 // pred_fallthru
          _
        // Predicated region
        $region59: #{graph_convolution_forward.2} parent=15 // pred_check
          %p283 = pneg %p98
        $region60: #{graph_convolution_forward.2} parent=15 // pred_check_branch
          %285 = sbr.rel (%p283) target = $region62
        $region61: #{graph_convolution_forward.2} parent=15 // pred_region
          %s286 = smul.u32 8, %s19
          %p287 = scmp.lt.s32.totalorder %s286, 31
          %s288 = scalar_select %p287, %s286, 31
          %s289 = smul.addr %s288, 8
          %s290 = scalar_lea.vmem %s2, %s289
          %s291 = smul.u32 8, %s19
        $region62: #{graph_convolution_forward.2} parent=15 // pred_fallthru
          _
      $region16: #{graph_convolution_forward.2} parent=5 // pred_fallthru
        _
      %p292 = scmp.le.s32.totalorder 1, %s12
      %p293 = scmp.lt.s32.totalorder %s12, 9
      %p294 = pnand %p292, %p293
      %p295 = pneg %p294
      // Predicated region
      $region63: #{graph_convolution_forward.2} parent=5 // pred_check
        _
      $region64: #{graph_convolution_forward.2} parent=5 // pred_check_branch
        %297 = sbr.rel (%p294) target = $region66
      $region65: #{graph_convolution_forward.2} parent=5 // pred_region
        %s298 = ssub.s32 %s12, 1
        %s299 = sand.u32 %s39, 1
        %s300 = sand.u32 %s39, 1
        %s301 = smul.addr %s300, 64
        %s302 = scalar_lea.vmem [#allocation3], %s301
        // Predicated region
        $region67: #{graph_convolution_forward.2} parent=65 // pred_check
          %p303 = pneg %p52
        $region68: #{graph_convolution_forward.2} parent=65 // pred_check_branch
          %305 = sbr.rel (%p303) target = $region70
        $region69: #{graph_convolution_forward.2} parent=65 // pred_region
          _
        $region70: #{graph_convolution_forward.2} parent=65 // pred_fallthru
          _
        %s306 = sand.u32 %s39, 1
        %s307 = sand.u32 %s39, 1
        %s308 = smul.addr %s307, 64
        %s309 = scalar_lea.vmem [#allocation3], %s308
        %p310 = pneg %p52
        %p311 = pneg %p49
        %s312 = smul.u32 16, %s22
        %p313 = scmp.lt.s32.totalorder %s312, 31
        %s314 = scalar_select %p313, %s312, 31
        %s315 = smul.addr %s314, 8
        %s316 = scalar_lea.vmem %s1, %s315
        %p317 = pneg %p78
        %p318 = pneg %p75
        %s319 = smul.u32 8, %s21
        %p320 = scmp.lt.s32.totalorder %s319, 31
        %s321 = scalar_select %p320, %s319, 31
        %s322 = smul.addr %s321, 8
        %s323 = scalar_lea.vmem %s2, %s322
        %p324 = pneg %p104
        %p325 = pneg %p101
        %p326 = pneg %p130
        %p327 = pneg %p127
        %s328 = smul.u32 8, %s21
        %p329 = scmp.lt.s32.totalorder %s328, 31
        %s330 = scalar_select %p329, %s328, 31
        %s331 = smul.addr %s330, 8
        %s332 = scalar_lea.vmem %s3, %s331
        %p333 = pneg %p156
        %p334 = pneg %p153
        %p335 = scmp.lt.s32.totalorder %s21, 3
        %s336 = scalar_select %p335, %s21, 3
        %s337 = smul.addr %s336, 8
        %s338 = scalar_lea.vmem %s4, %s337
        %p339 = pneg %p182
        %p340 = pneg %p179
        %p341 = scmp.lt.s32.totalorder %s21, 3
        %s342 = scalar_select %p341, %s21, 3
        %s343 = smul.addr %s342, 8
        %s344 = scalar_lea.vmem %s5, %s343
        %s345 = smul.u32 8, %s21
        %s346 = smul.u32 16, %s22
        %p347 = scmp.lt.s32.totalorder %s346, 31
        %s348 = scalar_select %p347, %s346, 31
        %s349 = smul.addr %s348, 8
        %s350 = scalar_lea.vmem %s1, %s349
        %s351 = smul.u32 16, %s22
        %s352 = smul.u32 8, %s21
        %p353 = scmp.lt.s32.totalorder %s352, 31
        %s354 = scalar_select %p353, %s352, 31
        %s355 = smul.addr %s354, 8
        %s356 = scalar_lea.vmem %s2, %s355
        %s357 = smul.u32 8, %s21
        %s358 = smul.u32 8, %s21
        %p359 = scmp.lt.s32.totalorder %s358, 31
        %s360 = scalar_select %p359, %s358, 31
        %s361 = smul.addr %s360, 8
        %s362 = scalar_lea.vmem %s3, %s361
        %s363 = smul.u32 8, %s21
        %p364 = scmp.lt.s32.totalorder %s21, 3
        %s365 = scalar_select %p364, %s21, 3
        %s366 = smul.addr %s365, 8
        %s367 = scalar_lea.vmem %s4, %s366
        %p368 = scmp.lt.s32.totalorder %s21, 3
        %s369 = scalar_select %p368, %s21, 3
        %s370 = smul.addr %s369, 8
        %s371 = scalar_lea.vmem %s5, %s370
        %p372 = scmp.eq.s32.totalorder %s22, 0
        // Predicated region
        $region71: #{graph_convolution_forward.2} parent=65 // pred_check
          %p373 = pneg %p372
        $region72: #{graph_convolution_forward.2} parent=65 // pred_check_branch
          %375 = sbr.rel (%p373) target = $region74
        $region73: #{graph_convolution_forward.2} parent=65 // pred_region
          %376 = vst [vmem:[#allocation2] sm:$0xff] 0.0
          %377 = vst [vmem:[#allocation2 + $0x8] sm:$0xff] 0.0
          %378 = vst [vmem:[#allocation2 + $0x10] sm:$0xff] 0.0
          %379 = vst [vmem:[#allocation2 + $0x18] sm:$0xff] 0.0
          %380 = vst [vmem:[#allocation2 + $0x20] sm:$0xff] 0.0
          %381 = vst [vmem:[#allocation2 + $0x28] sm:$0xff] 0.0
          %382 = vst [vmem:[#allocation2 + $0x30] sm:$0xff] 0.0
          %383 = vst [vmem:[#allocation2 + $0x38] sm:$0xff] 0.0
        $region74: #{graph_convolution_forward.2} parent=65 // pred_fallthru
          _
        %v384 = vld [vmem:[#allocation2] sm:$0xff]
        %v385 = vld [vmem:[#allocation2 + $0x8] sm:$0xff]
        %v386 = vld [vmem:[#allocation2 + $0x10] sm:$0xff]
        %v387 = vld [vmem:[#allocation2 + $0x18] sm:$0xff]
        %v388 = vld [vmem:[#allocation2 + $0x20] sm:$0xff]
        %v389 = vld [vmem:[#allocation2 + $0x28] sm:$0xff]
        %v390 = vld [vmem:[#allocation2 + $0x30] sm:$0xff]
        %v391 = vld [vmem:[#allocation2 + $0x38] sm:$0xff]
        %v392 = vld [vmem:[%s302] sm:$0xff]
        %v393 = vld [vmem:[%s302 + $0x8] sm:$0xff]
        %v394 = vld [vmem:[%s302 + $0x10] sm:$0xff]
        %v395 = vld [vmem:[%s302 + $0x18] sm:$0xff]
        %v396 = vld [vmem:[%s302 + $0x20] sm:$0xff]
        %v397 = vld [vmem:[%s302 + $0x28] sm:$0xff]
        %v398 = vld [vmem:[%s302 + $0x30] sm:$0xff]
        %v399 = vld [vmem:[%s302 + $0x38] sm:$0xff]
        %v400 = vld [vmem:[%s350] sm:$0xff]
        %v401 = vld [vmem:[%s350 + $0x8] sm:$0xff]
        %v402 = vld [vmem:[%s350 + $0x10] sm:$0xff]
        %v403 = vld [vmem:[%s350 + $0x18] sm:$0xff]
        %v404 = vld [vmem:[%s350 + $0x20] sm:$0xff]
        %v405 = vld [vmem:[%s350 + $0x28] sm:$0xff]
        %v406 = vld [vmem:[%s350 + $0x30] sm:$0xff]
        %v407 = vld [vmem:[%s350 + $0x38] sm:$0xff]
        %v408 = vld [vmem:[%s350 + $0x40] sm:$0xff]
        %v409 = vld [vmem:[%s350 + $0x48] sm:$0xff]
        %v410 = vld [vmem:[%s350 + $0x50] sm:$0xff]
        %v411 = vld [vmem:[%s350 + $0x58] sm:$0xff]
        %v412 = vld [vmem:[%s350 + $0x60] sm:$0xff]
        %v413 = vld [vmem:[%s350 + $0x68] sm:$0xff]
        %v414 = vld [vmem:[%s350 + $0x70] sm:$0xff]
        %v415 = vld [vmem:[%s350 + $0x78] sm:$0xff]
        %416 = vmatpush.msra.mxu0 %v415
        %417 = vmatpush.msra.mxu0 %v414
        %418 = vmatpush.msra.mxu0 %v413
        %419 = vmatpush.msra.mxu0 %v412
        %420 = vmatpush.msra.mxu0 %v411
        %421 = vmatpush.msra.mxu0 %v410
        %422 = vmatpush.msra.mxu0 %v409
        %423 = vmatpush.msra.mxu0 %v408
        %424 = vmatpush.msra.mxu0 %v407
        %425 = vmatpush.msra.mxu0 %v406
        %426 = vmatpush.msra.mxu0 %v405
        %427 = vmatpush.msra.mxu0 %v404
        %428 = vmatpush.msra.mxu0 %v403
        %429 = vmatpush.msra.mxu0 %v402
        %430 = vmatpush.msra.mxu0 %v401
        %431 = vmatpush.msra.mxu0 %v400
        %432 = vmatmul.f32.gmra.mxu0 %v392
        %v433 = vpop.f32.mrf.mxu0
        %v434 = vadd.f32 0.0, %v433
        %435 = vmatmul.f32.gmra.mxu0 %v393
        %v436 = vpop.f32.mrf.mxu0
        %v437 = vadd.f32 0.0, %v436
        %438 = vmatmul.f32.gmra.mxu0 %v394
        %v439 = vpop.f32.mrf.mxu0
        %v440 = vadd.f32 0.0, %v439
        %441 = vmatmul.f32.gmra.mxu0 %v395
        %v442 = vpop.f32.mrf.mxu0
        %v443 = vadd.f32 0.0, %v442
        %444 = vmatmul.f32.gmra.mxu0 %v396
        %v445 = vpop.f32.mrf.mxu0
        %v446 = vadd.f32 0.0, %v445
        %447 = vmatmul.f32.gmra.mxu0 %v397
        %v448 = vpop.f32.mrf.mxu0
        %v449 = vadd.f32 0.0, %v448
        %450 = vmatmul.f32.gmra.mxu0 %v398
        %v451 = vpop.f32.mrf.mxu0
        %v452 = vadd.f32 0.0, %v451
        %453 = vmatmul.f32.gmra.mxu0 %v399
        %v454 = vpop.f32.mrf.mxu0
        %v455 = vadd.f32 0.0, %v454
        %456 = vdwg.mxu0
        %v457 = vadd.f32 %v384, %v434
        %v458 = vadd.f32 %v385, %v437
        %v459 = vadd.f32 %v386, %v440
        %v460 = vadd.f32 %v387, %v443
        %v461 = vadd.f32 %v388, %v446
        %v462 = vadd.f32 %v389, %v449
        %v463 = vadd.f32 %v390, %v452
        %v464 = vadd.f32 %v391, %v455
        %465 = vst [vmem:[#allocation2] sm:$0xff] %v457
        %466 = vst [vmem:[#allocation2 + $0x8] sm:$0xff] %v458
        %467 = vst [vmem:[#allocation2 + $0x10] sm:$0xff] %v459
        %468 = vst [vmem:[#allocation2 + $0x18] sm:$0xff] %v460
        %469 = vst [vmem:[#allocation2 + $0x20] sm:$0xff] %v461
        %470 = vst [vmem:[#allocation2 + $0x28] sm:$0xff] %v462
        %471 = vst [vmem:[#allocation2 + $0x30] sm:$0xff] %v463
        %472 = vst [vmem:[#allocation2 + $0x38] sm:$0xff] %v464
        %p473 = scmp.eq.s32.totalorder %s22, 1
        // Predicated region
        $region75: #{graph_convolution_forward.2} parent=65 // pred_check
          %p474 = pneg %p473
        $region76: #{graph_convolution_forward.2} parent=65 // pred_check_branch
          %476 = sbr.rel (%p474) target = $region78
        $region77: #{graph_convolution_forward.2} parent=65 // pred_region
          %v477 = vld [vmem:[#allocation2] sm:$0xff]
          %v478 = vld [vmem:[#allocation2 + $0x8] sm:$0xff]
          %v479 = vld [vmem:[#allocation2 + $0x10] sm:$0xff]
          %v480 = vld [vmem:[#allocation2 + $0x18] sm:$0xff]
          %v481 = vld [vmem:[#allocation2 + $0x20] sm:$0xff]
          %v482 = vld [vmem:[#allocation2 + $0x28] sm:$0xff]
          %v483 = vld [vmem:[#allocation2 + $0x30] sm:$0xff]
          %v484 = vld [vmem:[#allocation2 + $0x38] sm:$0xff]
          %v485 = vld [vmem:[%s356] sm:$0xff]
          %v486 = vld [vmem:[%s356 + $0x8] sm:$0xff]
          %v487 = vld [vmem:[%s356 + $0x10] sm:$0xff]
          %v488 = vld [vmem:[%s356 + $0x18] sm:$0xff]
          %v489 = vld [vmem:[%s356 + $0x20] sm:$0xff]
          %v490 = vld [vmem:[%s356 + $0x28] sm:$0xff]
          %v491 = vld [vmem:[%s356 + $0x30] sm:$0xff]
          %v492 = vld [vmem:[%s356 + $0x38] sm:$0xff]
          %494 = vset.pattern.permute.xlu0 0
          %495 = vperm.xlu0 %494, %v485
          %v496 = vpop.permute.xlu0 %495
          %499 = vset.pattern.permute.xlu0 0
          %500 = vperm.xlu0 %499, %v486
          %v501 = vpop.permute.xlu0 %500
          %504 = vset.pattern.permute.xlu0 0
          %505 = vperm.xlu0 %504, %v487
          %v506 = vpop.permute.xlu0 %505
          %509 = vset.pattern.permute.xlu0 0
          %510 = vperm.xlu0 %509, %v488
          %v511 = vpop.permute.xlu0 %510
          %514 = vset.pattern.permute.xlu0 0
          %515 = vperm.xlu0 %514, %v489
          %v516 = vpop.permute.xlu0 %515
          %519 = vset.pattern.permute.xlu0 0
          %520 = vperm.xlu0 %519, %v490
          %v521 = vpop.permute.xlu0 %520
          %524 = vset.pattern.permute.xlu0 0
          %525 = vperm.xlu0 %524, %v491
          %v526 = vpop.permute.xlu0 %525
          %529 = vset.pattern.permute.xlu0 0
          %530 = vperm.xlu0 %529, %v492
          %v531 = vpop.permute.xlu0 %530
          %v533 = vmul.f32 %v477, %v496
          %v534 = vmul.f32 %v478, %v501
          %v535 = vmul.f32 %v479, %v506
          %v536 = vmul.f32 %v480, %v511
          %v537 = vmul.f32 %v481, %v516
          %v538 = vmul.f32 %v482, %v521
          %v539 = vmul.f32 %v483, %v526
          %v540 = vmul.f32 %v484, %v531
          %541 = vst [vmem:[%s362] sm:$0xff] %v533
          %542 = vst [vmem:[%s362 + $0x8] sm:$0xff] %v534
          %543 = vst [vmem:[%s362 + $0x10] sm:$0xff] %v535
          %544 = vst [vmem:[%s362 + $0x18] sm:$0xff] %v536
          %545 = vst [vmem:[%s362 + $0x20] sm:$0xff] %v537
          %546 = vst [vmem:[%s362 + $0x28] sm:$0xff] %v538
          %547 = vst [vmem:[%s362 + $0x30] sm:$0xff] %v539
          %548 = vst [vmem:[%s362 + $0x38] sm:$0xff] %v540
          %v549 = vadd.f32 %v533, %v534
          %v550 = vadd.f32 %v549, %v535
          %v551 = vadd.f32 %v550, %v536
          %v552 = vadd.f32 %v551, %v537
          %v553 = vadd.f32 %v552, %v538
          %v554 = vadd.f32 %v553, %v539
          %v555 = vadd.f32 %v554, %v540
          %556 = vst [vmem:[%s367] sm:$0xff] %v555
          %v557 = vmul.f32 %v533, %v533
          %v558 = vmul.f32 %v534, %v534
          %v559 = vmul.f32 %v535, %v535
          %v560 = vmul.f32 %v536, %v536
          %v561 = vmul.f32 %v537, %v537
          %v562 = vmul.f32 %v538, %v538
          %v563 = vmul.f32 %v539, %v539
          %v564 = vmul.f32 %v540, %v540
          %v565 = vadd.f32 %v557, %v558
          %v566 = vadd.f32 %v565, %v559
          %v567 = vadd.f32 %v566, %v560
          %v568 = vadd.f32 %v567, %v561
          %v569 = vadd.f32 %v568, %v562
          %v570 = vadd.f32 %v569, %v563
          %v571 = vadd.f32 %v570, %v564
          %572 = vst [vmem:[%s371] sm:$0xff] %v571
        $region78: #{graph_convolution_forward.2} parent=65 // pred_fallthru
          _
        %s573 = smul.u32 8, %s21
        %p574 = scmp.lt.s32.totalorder %s573, 31
        %s575 = scalar_select %p574, %s573, 31
        %s576 = smul.addr %s575, 8
        %s577 = scalar_lea.vmem %s3, %s576
        %p578 = scmp.lt.s32.totalorder %s21, 3
        %s579 = scalar_select %p578, %s21, 3
        %s580 = smul.addr %s579, 8
        %s581 = scalar_lea.vmem %s4, %s580
        %p582 = scmp.lt.s32.totalorder %s21, 3
        %s583 = scalar_select %p582, %s21, 3
        %s584 = smul.addr %s583, 8
        %s585 = scalar_lea.vmem %s5, %s584
        // Predicated region
        $region79: #{graph_convolution_forward.2} parent=65 // pred_check
          %p586 = pneg %p127
        $region80: #{graph_convolution_forward.2} parent=65 // pred_check_branch
          %588 = sbr.rel (%p586) target = $region82
        $region81: #{graph_convolution_forward.2} parent=65 // pred_region
          %s589 = smul.u32 8, %s21
        $region82: #{graph_convolution_forward.2} parent=65 // pred_fallthru
          _
        // Predicated region
        $region83: #{graph_convolution_forward.2} parent=65 // pred_check
          %p590 = pneg %p153
        $region84: #{graph_convolution_forward.2} parent=65 // pred_check_branch
          %592 = sbr.rel (%p590) target = $region86
        $region85: #{graph_convolution_forward.2} parent=65 // pred_region
          _
        $region86: #{graph_convolution_forward.2} parent=65 // pred_fallthru
          _
        // Predicated region
        $region87: #{graph_convolution_forward.2} parent=65 // pred_check
          %p593 = pneg %p179
        $region88: #{graph_convolution_forward.2} parent=65 // pred_check_branch
          %595 = sbr.rel (%p593) target = $region90
        $region89: #{graph_convolution_forward.2} parent=65 // pred_region
          _
        $region90: #{graph_convolution_forward.2} parent=65 // pred_fallthru
          _
      $region66: #{graph_convolution_forward.2} parent=5 // pred_fallthru
        _
      %p596 = scmp.le.s32.totalorder 2, %s12
      // Predicated region
      $region91: #{graph_convolution_forward.2} parent=5 // pred_check
        %p597 = pneg %p596
      $region92: #{graph_convolution_forward.2} parent=5 // pred_check_branch
        %599 = sbr.rel (%p597) target = $region94
      $region93: #{graph_convolution_forward.2} parent=5 // pred_region
        %s600 = ssub.s32 %s12, 2
        // Predicated region
        $region95: #{graph_convolution_forward.2} parent=93 // pred_check
          %p601 = pneg %p133
        $region96: #{graph_convolution_forward.2} parent=93 // pred_check_branch
          %603 = sbr.rel (%p601) target = $region98
        $region97: #{graph_convolution_forward.2} parent=93 // pred_region
          %s604 = smul.u32 8, %s23
          %p605 = scmp.lt.s32.totalorder %s604, 31
          %s606 = scalar_select %p605, %s604, 31
          %s607 = smul.addr %s606, 8
          %s608 = scalar_lea.vmem %s3, %s607
        $region98: #{graph_convolution_forward.2} parent=93 // pred_fallthru
          _
        // Predicated region
        $region99: #{graph_convolution_forward.2} parent=93 // pred_check
          %p609 = pneg %p159
        $region100: #{graph_convolution_forward.2} parent=93 // pred_check_branch
          %611 = sbr.rel (%p609) target = $region102
        $region101: #{graph_convolution_forward.2} parent=93 // pred_region
          %p612 = scmp.lt.s32.totalorder %s23, 3
          %s613 = scalar_select %p612, %s23, 3
          %s614 = smul.addr %s613, 8
          %s615 = scalar_lea.vmem %s4, %s614
        $region102: #{graph_convolution_forward.2} parent=93 // pred_fallthru
          _
        // Predicated region
        $region103: #{graph_convolution_forward.2} parent=93 // pred_check
          %p616 = pneg %p185
        $region104: #{graph_convolution_forward.2} parent=93 // pred_check_branch
          %618 = sbr.rel (%p616) target = $region106
        $region105: #{graph_convolution_forward.2} parent=93 // pred_region
          %p619 = scmp.lt.s32.totalorder %s23, 3
          %s620 = scalar_select %p619, %s23, 3
          %s621 = smul.addr %s620, 8
          %s622 = scalar_lea.vmem %s5, %s621
        $region106: #{graph_convolution_forward.2} parent=93 // pred_fallthru
          _
      $region94: #{graph_convolution_forward.2} parent=5 // pred_fallthru
        _
    $region6: #{graph_convolution_forward.2} parent=1 // loop_footer
      %s16 = sadd.s32 1, %s12
    $region7: #{graph_convolution_forward.2} parent=1 // loop_footer_branch
      %11 = sbr.rel target = $region3
    $region8: #{graph_convolution_forward.2} parent=1 // loop_exit
      _

</llo_original>
